<compile_context>
chip_gen: v7x
topology: tpu7x:2x2x1
jax: 0.10.0
libtpu: 0.0.40
codegen_flags: <defaults>
</compile_context>

<pallas_src>
import math

import numpy as np
import jax
import jax.numpy as jnp
from jax.experimental import pallas as pl
from jax.experimental.pallas import tpu as pltpu


_TARGET_BLOCK_BYTES = 2 * 1024 * 1024    # per-operand block (~2 MiB)
_TARGET_GRID_STEPS = 8                   # even, >=4: v7x megacore + pipeline steady state
_PALLAS_MIN_TOTAL_BYTES = 128 * 1024     # below this, XLA's fused add wins
_VMEM_LIMIT_BYTES = 32 * 1024 * 1024     # safe on v5e/v6e (128 MiB) and v7x (64 MiB phys)


def _cdiv(a, b):
    return -(-a // b)


def _round_up(a, b):
    return _cdiv(a, b) * b


def _add3_kernel(a_ref, b_ref, c_ref, o_ref):
    # Elementwise on the VPU; the store is a full lane-dense tile.
    o_ref[...] = (a_ref[...] + (b_ref[...] + c_ref[...])).astype(o_ref.dtype)


def _plan_block_rows(rows, lanes, itemsizes):
    """Rows per block for a (rows, lanes) stream; dtype-aware and VMEM-budgeted."""
    min_item = min(itemsizes)
    max_item = max(itemsizes)
    sublane_mult = max(8, 32 // min_item)          # 8 f32, 16 bf16/f16, 32 int8/fp8
    cap = max(
        sublane_mult,
        (_TARGET_BLOCK_BYTES // (lanes * max_item)) // sublane_mult * sublane_mult,
    )
    want = _round_up(_cdiv(rows, _TARGET_GRID_STEPS), sublane_mult)
    block_rows = min(cap, want)
    if block_rows >= rows:
        return rows                                # single full-extent block (always legal)
    steps = _cdiv(rows, block_rows)
    if steps > 1 and steps % 2 == 1:               # prefer an even step count (v7x: 2 TCs)
        alt = _round_up(_cdiv(rows, steps + 1), sublane_mult)
        if sublane_mult <= alt < rows and _cdiv(rows, alt) % 2 == 0:
            block_rows = alt
    return block_rows


def _add3_pallas_2d(a2, b2, c2, out_dtype, itemsizes):
    rows, lanes = a2.shape
    block_rows = _plan_block_rows(rows, lanes, itemsizes)
    grid = (_cdiv(rows, block_rows),)
    spec = pl.BlockSpec((block_rows, lanes), lambda i: (i, 0))
    n = rows * lanes
    in_bytes = n * (itemsizes[0] + itemsizes[1] + itemsizes[2])
    out_bytes = n * itemsizes[3]
    return pl.pallas_call(
        _add3_kernel,
        out_shape=jax.ShapeDtypeStruct((rows, lanes), out_dtype),
        grid_spec=pltpu.PrefetchScalarGridSpec(
            num_scalar_prefetch=0,
            grid=grid,
            in_specs=[spec, spec, spec],
            out_specs=spec,
        ),
        compiler_params=pltpu.CompilerParams(
            dimension_semantics=("parallel",),
            vmem_limit_bytes=_VMEM_LIMIT_BYTES,
        ),
        cost_estimate=pl.CostEstimate(
            flops=2 * n, transcendentals=0, bytes_accessed=in_bytes + out_bytes),
    )(a2, b2, c2)


def add_res(xs):
    """Pallas equivalent of Add_res.forward: xs is a sequence of 3 arrays."""
    a, b, c = xs
    if not (a.shape == b.shape == c.shape):
        # TODO(synk): torch.add broadcasting between mismatched shapes is left to XLA.
        return a + (b + c)

    out_dtype = jnp.result_type(a.dtype, b.dtype, c.dtype)
    orig_shape = a.shape
    n = math.prod(orig_shape) if orig_shape else 1
    itemsizes = [t.dtype.itemsize for t in (a, b, c)] + [np.dtype(out_dtype).itemsize]

    # Tiny inputs: fixed pallas_call / pipeline overhead dominates; XLA fuses the add.
    if n == 0 or n * sum(itemsizes) < _PALLAS_MIN_TOTAL_BYTES:
        return (a + (b + c)).astype(out_dtype)

    af, bf, cf = a.reshape(-1), b.reshape(-1), c.reshape(-1)   # free metadata reshapes
    n_main = (n // 128) * 128
    tail = None
    if n_main < n:
        # Ragged tail (< 128 elements): tiny XLA add; kernel handles the aligned prefix.
        tail = (af[n_main:] + (bf[n_main:] + cf[n_main:])).astype(out_dtype)
        af, bf, cf = af[:n_main], bf[:n_main], cf[:n_main]

    # Lane width: widest of {512, 256, 128} that keeps the reshape copy-free.
    lanes = 128
    for cand in (512, 256):
        if n_main % cand == 0:
            lanes = cand
            break
    rows = n_main // lanes

    out2 = _add3_pallas_2d(
        af.reshape(rows, lanes), bf.reshape(rows, lanes), cf.reshape(rows, lanes),
        out_dtype, itemsizes)

    flat = out2.reshape(-1)
    if tail is not None:
        flat = jnp.concatenate([flat, tail])
    return flat.reshape(orig_shape)


if __name__ == "__main__":
    key = jax.random.PRNGKey(0)

    def make(shape, i):
        return jax.random.normal(jax.random.fold_in(key, i), shape, dtype=jnp.float32)

    # 1) Pallas path: last dim 128-aligned, above the small-input bypass threshold.
    shape = (2, 4, 32, 128)
    x0, x1, x2 = (make(shape, i) for i in range(3))
    out = jax.block_until_ready(add_res([x0, x1, x2]))
    ref = jax.block_until_ready(x0 + (x1 + x2))
    assert out.shape == ref.shape and out.dtype == ref.dtype
    np.testing.assert_allclose(np.asarray(out), np.asarray(ref), rtol=1e-6, atol=1e-6)

    # 2) Ragged element count: kernel on the 128-aligned prefix + XLA tail.
    shape2 = (7, 5, 37, 31)
    y0, y1, y2 = (make(shape2, 10 + i) for i in range(3))
    out2 = jax.block_until_ready(add_res([y0, y1, y2]))
    np.testing.assert_allclose(np.asarray(out2), np.asarray(y0 + (y1 + y2)),
                               rtol=1e-6, atol=1e-6)

    # 3) Tiny input (original demo scale): takes the XLA bypass, still correct.
    shape3 = (2, 4, 16, 16)
    z0, z1, z2 = (make(shape3, 20 + i) for i in range(3))
    out3 = jax.block_until_ready(add_res([z0, z1, z2]))
    np.testing.assert_allclose(np.asarray(out3), np.asarray(z0 + (z1 + z2)),
                               rtol=1e-6, atol=1e-6)

    print("KERNEL_OK")
</pallas_src>

<mosaic_0001>
module attributes {stable_mosaic.version = 11 : i64} {
  func.func @_add3_kernel(%arg0: i32, %arg1: memref<8x512xf32, #tpu.memory_space<vmem>>, %arg2: memref<8x512xf32, #tpu.memory_space<vmem>>, %arg3: memref<8x512xf32, #tpu.memory_space<vmem>>, %arg4: memref<8x512xf32, #tpu.memory_space<vmem>>) attributes {dimension_semantics = [#tpu.dimension_semantics<parallel>], iteration_bounds = array<i64: 8>, scalar_prefetch = 0 : i64, scratch_operands = 0 : i64, tpu.core_type = #tpu.core_type<tc>, window_params = [{transform_indices = @transform_0, window_bounds = array<i64: 8, 512>}, {transform_indices = @transform_1, window_bounds = array<i64: 8, 512>}, {transform_indices = @transform_2, window_bounds = array<i64: 8, 512>}, {transform_indices = @transform_3, window_bounds = array<i64: 8, 512>}]} {
    %c0 = arith.constant 0 : index
    %c0_0 = arith.constant 0 : index
    %0 = vector.load %arg1[%c0, %c0_0] : memref<8x512xf32, #tpu.memory_space<vmem>>, vector<8x512xf32>
    %c0_1 = arith.constant 0 : index
    %c0_2 = arith.constant 0 : index
    %1 = vector.load %arg2[%c0_1, %c0_2] : memref<8x512xf32, #tpu.memory_space<vmem>>, vector<8x512xf32>
    %c0_3 = arith.constant 0 : index
    %c0_4 = arith.constant 0 : index
    %2 = vector.load %arg3[%c0_3, %c0_4] : memref<8x512xf32, #tpu.memory_space<vmem>>, vector<8x512xf32>
    %3 = arith.addf %1, %2 : vector<8x512xf32>
    %4 = arith.addf %0, %3 : vector<8x512xf32>
    %c0_5 = arith.constant 0 : index
    %c0_6 = arith.constant 0 : index
    %5 = vector.load %arg4[%c0_5, %c0_6] : memref<8x512xf32, #tpu.memory_space<vmem>>, vector<8x512xf32>
    tpu.vector_store %arg4[%c0_5, %c0_6], %4 {strides = array<i32>} : memref<8x512xf32, #tpu.memory_space<vmem>>, vector<8x512xf32>,
    return
  }
  func.func @transform_0(%arg0: i32) -> (i32, i32) {
    %c0_i32 = arith.constant 0 : i32
    %c0_i32_0 = arith.constant 0 : i32
    return %arg0, %c0_i32 : i32, i32
  }
  func.func @transform_1(%arg0: i32) -> (i32, i32) {
    %c0_i32 = arith.constant 0 : i32
    %c0_i32_0 = arith.constant 0 : i32
    return %arg0, %c0_i32 : i32, i32
  }
  func.func @transform_2(%arg0: i32) -> (i32, i32) {
    %c0_i32 = arith.constant 0 : i32
    %c0_i32_0 = arith.constant 0 : i32
    return %arg0, %c0_i32 : i32, i32
  }
  func.func @transform_3(%arg0: i32) -> (i32, i32) {
    %c0_i32 = arith.constant 0 : i32
    %c0_i32_0 = arith.constant 0 : i32
    return %arg0, %c0_i32 : i32, i32
  }
}

</mosaic_0001>

<llo_original>
// kernel: tpu_custom_call.1
$region0: #{tpu_custom_call.1}
  #allocation0 [shape = 'u32[]', space=smem, size = 0x4, offset = 0x4, fixed_abs, tag = 'smem constant byte address 0x4 - core index']
  #allocation1 [shape = 'u32[144,128]{1,0:T(1,128)}', space=vmem, size = 0x12000, scoped, tag = 'internal scratch']
  %s0 = inlined_call_operand.hbm [shape: f32[64,512], index: 0, kind: input, shape index: {}]
  %s1 = inlined_call_operand.hbm [shape: f32[64,512], index: 1, kind: input, shape index: {}]
  %s2 = inlined_call_operand.hbm [shape: f32[64,512], index: 2, kind: input, shape index: {}]
  %s3 = inlined_call_operand.hbm [shape: f32[64,512], index: 3, kind: output, shape index: {}]
  %s4 = sld [smem:[#allocation0]]
  $region57: #{tpu_custom_call.1} parent=0
    _
  %s6 = ssub.s32 1, %s4
  %s7 = scalar_select 0, %s6, %s4
  $region1: #{tpu_custom_call.1} parent=0
    #allocation2 [shape = 'u8[32768]{0}', space=vmem, size = 0x8000, scoped, tag = 'input window, operand 0']
    #allocation3 [shape = 's32[2]{0}', space=sflag, size = 0x8, scoped, tag = 'scoped memory for tpu_custom_call.1']
    #allocation4 [shape = 's32[2]{0}', space=sflag, size = 0x8, scoped, tag = 'scoped memory for tpu_custom_call.1']
    #allocation5 [shape = 'u8[32768]{0}', space=vmem, size = 0x8000, scoped, tag = 'input window, operand 1']
    #allocation6 [shape = 's32[2]{0}', space=sflag, size = 0x8, scoped, tag = 'scoped memory for tpu_custom_call.1']
    #allocation7 [shape = 'u8[32768]{0}', space=vmem, size = 0x8000, scoped, tag = 'input window, operand 2']
    #allocation8 [shape = 'u8[32768]{0}', space=vmem, size = 0x8000, scoped, tag = 'output window, operand 0']
    %8 = vsyncpa [#allocation3], 0
    %s9 = scalar_lea.sflag [#allocation3], 1
    %10 = vsyncpa %s9, 0
    %11 = vsyncpa [#allocation6], 0
    %s12 = scalar_lea.sflag [#allocation6], 1
    %13 = vsyncpa %s12, 0
    %14 = vsyncpa [#allocation4], 0
    %s15 = scalar_lea.sflag [#allocation4], 1
    %16 = vsyncpa %s15, 0
    loop: start=0, step=1, limit=10
    $region2: #{tpu_custom_call.1} parent=1 // loop_pre_header
      _
    $region3: #{tpu_custom_call.1} parent=1 // loop_header
      %s18 = sphi 0, %s22
      %p19 = scmp.ge.s32.totalorder %s18, 10
      %s28 = sphi 0, %s30
      %s31 = sphi 0, %s28
      %s32 = sphi 0, %s31
      %s48 = sphi 0, %s32
      %s54 = sphi 0, %s56
      %s57 = sphi 0, %s54
      %s58 = sphi 0, %s57
      %s74 = sphi 0, %s58
      %s80 = sphi 0, %s82
      %s83 = sphi 0, %s80
      %s84 = sphi 0, %s83
      %s100 = sphi 0, %s84
      %s106 = sphi 0, %s108
      %s109 = sphi 0, %s106
      %s110 = sphi 0, %s109
      %s126 = sphi 0, %s110
    $region4: #{tpu_custom_call.1} parent=1 // loop_header_branch
      %21 = sbr.rel (%p19) target = $region8
    $region5: #{tpu_custom_call.1} parent=1 // loop_body
      %s23 = ssub.s32 %s18, 1
      %s24 = ssub.s32 %s18, 2
      %s25 = sadd.s32 %s18, 1
      %s26 = ssub.s32 %s18, %s25
      %p27 = scmp.eq.s32.totalorder %s26, 0
      %s29 = sadd.s32 %s28, 1
      %s30 = scalar_select %p27, %s28, %s29
      %p33 = pneg %p27
      %p34 = scmp.eq.s32.totalorder %s18, 7
      %p35 = por %p33, %p34
      %p36 = scmp.ne.s32.totalorder %s28, %s31
      %p37 = scmp.eq.s32.totalorder %s18, 0
      %p38 = por %p36, %p37
      %p39 = scmp.ne.s32.totalorder %s28, %s31
      %p40 = scmp.eq.s32.totalorder %s23, 7
      %p41 = por %p39, %p40
      %p42 = scmp.ne.s32.totalorder %s31, %s32
      %p43 = scmp.eq.s32.totalorder %s23, 0
      %p44 = por %p42, %p43
      %p45 = scmp.ne.s32.totalorder %s31, %s32
      %p46 = scmp.eq.s32.totalorder %s24, 7
      %p47 = por %p45, %p46
      %p49 = scmp.ne.s32.totalorder %s32, %s48
      %p50 = scmp.eq.s32.totalorder %s24, 0
      %p51 = por %p49, %p50
      %s52 = ssub.s32 %s18, %s25
      %p53 = scmp.eq.s32.totalorder %s52, 0
      %s55 = sadd.s32 %s54, 1
      %s56 = scalar_select %p53, %s54, %s55
      %p59 = pneg %p53
      %p60 = scmp.eq.s32.totalorder %s18, 7
      %p61 = por %p59, %p60
      %p62 = scmp.ne.s32.totalorder %s54, %s57
      %p63 = scmp.eq.s32.totalorder %s18, 0
      %p64 = por %p62, %p63
      %p65 = scmp.ne.s32.totalorder %s54, %s57
      %p66 = scmp.eq.s32.totalorder %s23, 7
      %p67 = por %p65, %p66
      %p68 = scmp.ne.s32.totalorder %s57, %s58
      %p69 = scmp.eq.s32.totalorder %s23, 0
      %p70 = por %p68, %p69
      %p71 = scmp.ne.s32.totalorder %s57, %s58
      %p72 = scmp.eq.s32.totalorder %s24, 7
      %p73 = por %p71, %p72
      %p75 = scmp.ne.s32.totalorder %s58, %s74
      %p76 = scmp.eq.s32.totalorder %s24, 0
      %p77 = por %p75, %p76
      %s78 = ssub.s32 %s18, %s25
      %p79 = scmp.eq.s32.totalorder %s78, 0
      %s81 = sadd.s32 %s80, 1
      %s82 = scalar_select %p79, %s80, %s81
      %p85 = pneg %p79
      %p86 = scmp.eq.s32.totalorder %s18, 7
      %p87 = por %p85, %p86
      %p88 = scmp.ne.s32.totalorder %s80, %s83
      %p89 = scmp.eq.s32.totalorder %s18, 0
      %p90 = por %p88, %p89
      %p91 = scmp.ne.s32.totalorder %s80, %s83
      %p92 = scmp.eq.s32.totalorder %s23, 7
      %p93 = por %p91, %p92
      %p94 = scmp.ne.s32.totalorder %s83, %s84
      %p95 = scmp.eq.s32.totalorder %s23, 0
      %p96 = por %p94, %p95
      %p97 = scmp.ne.s32.totalorder %s83, %s84
      %p98 = scmp.eq.s32.totalorder %s24, 7
      %p99 = por %p97, %p98
      %p101 = scmp.ne.s32.totalorder %s84, %s100
      %p102 = scmp.eq.s32.totalorder %s24, 0
      %p103 = por %p101, %p102
      %s104 = ssub.s32 %s18, %s25
      %p105 = scmp.eq.s32.totalorder %s104, 0
      %s107 = sadd.s32 %s106, 1
      %s108 = scalar_select %p105, %s106, %s107
      %p111 = pneg %p105
      %p112 = scmp.eq.s32.totalorder %s18, 7
      %p113 = por %p111, %p112
      %p114 = scmp.ne.s32.totalorder %s106, %s109
      %p115 = scmp.eq.s32.totalorder %s18, 0
      %p116 = por %p114, %p115
      %p117 = scmp.ne.s32.totalorder %s106, %s109
      %p118 = scmp.eq.s32.totalorder %s23, 7
      %p119 = por %p117, %p118
      %p120 = scmp.ne.s32.totalorder %s109, %s110
      %p121 = scmp.eq.s32.totalorder %s23, 0
      %p122 = por %p120, %p121
      %p123 = scmp.ne.s32.totalorder %s109, %s110
      %p124 = scmp.eq.s32.totalorder %s24, 7
      %p125 = por %p123, %p124
      %p127 = scmp.ne.s32.totalorder %s110, %s126
      %p128 = scmp.eq.s32.totalorder %s24, 0
      %p129 = por %p127, %p128
      %p130 = scmp.le.s32.totalorder 1, %s18
      %p131 = scmp.lt.s32.totalorder %s18, 9
      %p132 = pnand %p130, %p131
      %p133 = pneg %p132
      // Predicated region
      $region9: #{tpu_custom_call.1} parent=5 // pred_check
        _
      $region10: #{tpu_custom_call.1} parent=5 // pred_check_branch
        %135 = sbr.rel (%p132) target = $region12
      $region11: #{tpu_custom_call.1} parent=5 // pred_region
        %s136 = ssub.s32 %s18, 1
      $region12: #{tpu_custom_call.1} parent=5 // pred_fallthru
        _
      %p137 = scmp.lt.s32.totalorder %s18, 8
      // Predicated region
      $region13: #{tpu_custom_call.1} parent=5 // pred_check
        %p138 = pneg %p137
      $region14: #{tpu_custom_call.1} parent=5 // pred_check_branch
        %140 = sbr.rel (%p138) target = $region16
      $region15: #{tpu_custom_call.1} parent=5 // pred_region
        // Predicated region
        $region17: #{tpu_custom_call.1} parent=15 // pred_check
          %p141 = pneg %p38
        $region18: #{tpu_custom_call.1} parent=15 // pred_check_branch
          %143 = sbr.rel (%p141) target = $region20
        $region19: #{tpu_custom_call.1} parent=15 // pred_region
          %s144 = sand.u32 %s28, 1
          %s145 = scalar_lea.sflag [#allocation3], %s144
          %s146 = sand.u32 %s28, 1
          %s147 = smul.addr %s146, 32
          %s148 = scalar_lea.vmem [#allocation2], %s147
          %s150 = ssub.s32 512, 512
          %151 = vsyncadd %s145, %s150
          %s152 = smul.addr %s18, 4
          %s153 = smul.addr %s152, 128
          %s154 = scalar_lea.hbm %s0, %s153
          %s156 = sshll.u32 %s148, 4
          %s157 = int_to_ptr.vmem [resolvable:$true] %s156
          %159 = dma.hbm_to_vmem [thread:$0]  %s154, 512, %s157, %s145
        $region20: #{tpu_custom_call.1} parent=15 // pred_fallthru
          _
        // Predicated region
        $region21: #{tpu_custom_call.1} parent=15 // pred_check
          %p160 = pneg %p64
        $region22: #{tpu_custom_call.1} parent=15 // pred_check_branch
          %162 = sbr.rel (%p160) target = $region24
        $region23: #{tpu_custom_call.1} parent=15 // pred_region
          %s163 = sand.u32 %s18, 1
          %s164 = scalar_lea.sflag [#allocation6], %s163
          %s165 = sand.u32 %s54, 1
          %s166 = smul.addr %s165, 32
          %s167 = scalar_lea.vmem [#allocation5], %s166
          %s169 = ssub.s32 512, 512
          %170 = vsyncadd %s164, %s169
          %s171 = smul.addr %s18, 4
          %s172 = smul.addr %s171, 128
          %s173 = scalar_lea.hbm %s1, %s172
          %s175 = sshll.u32 %s167, 4
          %s176 = int_to_ptr.vmem [resolvable:$true] %s175
          %178 = dma.hbm_to_vmem [thread:$0]  %s173, 512, %s176, %s164
        $region24: #{tpu_custom_call.1} parent=15 // pred_fallthru
          _
        // Predicated region
        $region25: #{tpu_custom_call.1} parent=15 // pred_check
          %p179 = pneg %p90
        $region26: #{tpu_custom_call.1} parent=15 // pred_check_branch
          %181 = sbr.rel (%p179) target = $region28
        $region27: #{tpu_custom_call.1} parent=15 // pred_region
          %s182 = sand.u32 %s18, 1
          %s183 = scalar_lea.sflag [#allocation6], %s182
          %s184 = sand.u32 %s80, 1
          %s185 = smul.addr %s184, 32
          %s186 = scalar_lea.vmem [#allocation7], %s185
          %s188 = ssub.s32 512, 512
          %189 = vsyncadd %s183, %s188
          %s190 = smul.addr %s18, 4
          %s191 = smul.addr %s190, 128
          %s192 = scalar_lea.hbm %s2, %s191
          %s194 = sshll.u32 %s186, 4
          %s195 = int_to_ptr.vmem [resolvable:$true] %s194
          %197 = dma.hbm_to_vmem [thread:$0]  %s192, 512, %s195, %s183
        $region28: #{tpu_custom_call.1} parent=15 // pred_fallthru
          _
      $region16: #{tpu_custom_call.1} parent=5 // pred_fallthru
        _
      %p198 = scmp.le.s32.totalorder 1, %s18
      %p199 = scmp.lt.s32.totalorder %s18, 9
      %p200 = pnand %p198, %p199
      %p201 = pneg %p200
      // Predicated region
      $region29: #{tpu_custom_call.1} parent=5 // pred_check
        _
      $region30: #{tpu_custom_call.1} parent=5 // pred_check_branch
        %203 = sbr.rel (%p200) target = $region32
      $region31: #{tpu_custom_call.1} parent=5 // pred_region
        %s204 = ssub.s32 %s18, 1
        %s205 = sand.u32 %s31, 1
        %s206 = scalar_lea.sflag [#allocation3], %s205
        %s207 = sand.u32 %s31, 1
        %s208 = smul.addr %s207, 32
        %s209 = scalar_lea.vmem [#allocation2], %s208
        // Predicated region
        $region33: #{tpu_custom_call.1} parent=31 // pred_check
          %p210 = pneg %p44
        $region34: #{tpu_custom_call.1} parent=31 // pred_check_branch
          %212 = sbr.rel (%p210) target = $region36
        $region35: #{tpu_custom_call.1} parent=31 // pred_region
          %213 = dma.done %s206, 512
        $region36: #{tpu_custom_call.1} parent=31 // pred_fallthru
          _
        %s214 = sand.u32 %s23, 1
        %s215 = scalar_lea.sflag [#allocation6], %s214
        %s216 = sand.u32 %s57, 1
        %s217 = smul.addr %s216, 32
        %s218 = scalar_lea.vmem [#allocation5], %s217
        // Predicated region
        $region37: #{tpu_custom_call.1} parent=31 // pred_check
          %p219 = pneg %p70
        $region38: #{tpu_custom_call.1} parent=31 // pred_check_branch
          %221 = sbr.rel (%p219) target = $region40
        $region39: #{tpu_custom_call.1} parent=31 // pred_region
          %222 = dma.done %s215, 512
        $region40: #{tpu_custom_call.1} parent=31 // pred_fallthru
          _
        %s223 = sand.u32 %s23, 1
        %s224 = scalar_lea.sflag [#allocation6], %s223
        %s225 = sand.u32 %s83, 1
        %s226 = smul.addr %s225, 32
        %s227 = scalar_lea.vmem [#allocation7], %s226
        // Predicated region
        $region41: #{tpu_custom_call.1} parent=31 // pred_check
          %p228 = pneg %p96
        $region42: #{tpu_custom_call.1} parent=31 // pred_check_branch
          %230 = sbr.rel (%p228) target = $region44
        $region43: #{tpu_custom_call.1} parent=31 // pred_region
          %231 = dma.done %s224, 512
        $region44: #{tpu_custom_call.1} parent=31 // pred_fallthru
          _
        %s232 = sand.u32 %s31, 1
        %s233 = scalar_lea.sflag [#allocation3], %s232
        %s234 = sand.u32 %s31, 1
        %s235 = smul.addr %s234, 32
        %s236 = scalar_lea.vmem [#allocation2], %s235
        %p237 = pneg %p44
        %p238 = pneg %p41
        %s239 = sand.u32 %s23, 1
        %s240 = scalar_lea.sflag [#allocation6], %s239
        %s241 = sand.u32 %s57, 1
        %s242 = smul.addr %s241, 32
        %s243 = scalar_lea.vmem [#allocation5], %s242
        %p244 = pneg %p70
        %p245 = pneg %p67
        %s246 = sand.u32 %s23, 1
        %s247 = scalar_lea.sflag [#allocation6], %s246
        %s248 = sand.u32 %s83, 1
        %s249 = smul.addr %s248, 32
        %s250 = scalar_lea.vmem [#allocation7], %s249
        %p251 = pneg %p96
        %p252 = pneg %p93
        %p253 = pneg %p122
        %p254 = pneg %p119
        %s255 = sand.u32 %s109, 1
        %s256 = scalar_lea.sflag [#allocation4], %s255
        %s257 = sand.u32 %s109, 1
        %s258 = smul.addr %s257, 32
        %s259 = scalar_lea.vmem [#allocation8], %s258
        %v260 = vld [vmem:[%s209] sm:$0xff]
        %v261 = vld [vmem:[%s209 + $0x8] sm:$0xff]
        %v262 = vld [vmem:[%s209 + $0x10] sm:$0xff]
        %v263 = vld [vmem:[%s209 + $0x18] sm:$0xff]
        %v264 = vld [vmem:[%s218] sm:$0xff]
        %v265 = vld [vmem:[%s218 + $0x8] sm:$0xff]
        %v266 = vld [vmem:[%s218 + $0x10] sm:$0xff]
        %v267 = vld [vmem:[%s218 + $0x18] sm:$0xff]
        %v268 = vld [vmem:[%s227] sm:$0xff]
        %v269 = vld [vmem:[%s227 + $0x8] sm:$0xff]
        %v270 = vld [vmem:[%s227 + $0x10] sm:$0xff]
        %v271 = vld [vmem:[%s227 + $0x18] sm:$0xff]
        %v272 = vadd.f32 %v264, %v268
        %v273 = vadd.f32 %v265, %v269
        %v274 = vadd.f32 %v266, %v270
        %v275 = vadd.f32 %v267, %v271
        %v276 = vadd.f32 %v260, %v272
        %v277 = vadd.f32 %v261, %v273
        %v278 = vadd.f32 %v262, %v274
        %v279 = vadd.f32 %v263, %v275
        %280 = vst [vmem:[%s259] sm:$0xff] %v276
        %281 = vst [vmem:[%s259 + $0x8] sm:$0xff] %v277
        %282 = vst [vmem:[%s259 + $0x10] sm:$0xff] %v278
        %283 = vst [vmem:[%s259 + $0x18] sm:$0xff] %v279
        %s284 = sand.u32 %s109, 1
        %s285 = scalar_lea.sflag [#allocation4], %s284
        %s286 = sand.u32 %s109, 1
        %s287 = smul.addr %s286, 32
        %s288 = scalar_lea.vmem [#allocation8], %s287
        // Predicated region
        $region45: #{tpu_custom_call.1} parent=31 // pred_check
          %p289 = pneg %p119
        $region46: #{tpu_custom_call.1} parent=31 // pred_check_branch
          %291 = sbr.rel (%p289) target = $region48
        $region47: #{tpu_custom_call.1} parent=31 // pred_region
          %s293 = ssub.s32 512, 512
          %294 = vsyncadd %s285, %s293
          %s295 = smul.addr %s23, 4
          %s296 = smul.addr %s295, 128
          %s297 = scalar_lea.hbm %s3, %s296
          %s299 = sshll.u32 %s288, 4
          %s300 = int_to_ptr.vmem [resolvable:$true] %s299
          %302 = dma.vmem_to_hbm [thread:$0]  %s300, 512, %s297, %s285
        $region48: #{tpu_custom_call.1} parent=31 // pred_fallthru
          _
      $region32: #{tpu_custom_call.1} parent=5 // pred_fallthru
        _
      %p303 = scmp.le.s32.totalorder 2, %s18
      // Predicated region
      $region49: #{tpu_custom_call.1} parent=5 // pred_check
        %p304 = pneg %p303
      $region50: #{tpu_custom_call.1} parent=5 // pred_check_branch
        %306 = sbr.rel (%p304) target = $region52
      $region51: #{tpu_custom_call.1} parent=5 // pred_region
        %s307 = ssub.s32 %s18, 2
        // Predicated region
        $region53: #{tpu_custom_call.1} parent=51 // pred_check
          %p308 = pneg %p125
        $region54: #{tpu_custom_call.1} parent=51 // pred_check_branch
          %310 = sbr.rel (%p308) target = $region56
        $region55: #{tpu_custom_call.1} parent=51 // pred_region
          %s311 = sand.u32 %s110, 1
          %s312 = scalar_lea.sflag [#allocation4], %s311
          %s313 = sand.u32 %s110, 1
          %s314 = smul.addr %s313, 32
          %s315 = scalar_lea.vmem [#allocation8], %s314
          %316 = dma.done %s312, 512
        $region56: #{tpu_custom_call.1} parent=51 // pred_fallthru
          _
      $region52: #{tpu_custom_call.1} parent=5 // pred_fallthru
        _
    $region6: #{tpu_custom_call.1} parent=1 // loop_footer
      %s22 = sadd.s32 1, %s18
    $region7: #{tpu_custom_call.1} parent=1 // loop_footer_branch
      %17 = sbr.rel target = $region3
    $region8: #{tpu_custom_call.1} parent=1 // loop_exit
      _
    %317 = vsyncpa [#allocation3], 1
    %s318 = scalar_lea.sflag [#allocation3], 1
    %319 = vsyncpa %s318, 1
    %320 = vsyncpa [#allocation6], 1
    %s321 = scalar_lea.sflag [#allocation6], 1
    %322 = vsyncpa %s321, 1
    %323 = vsyncpa [#allocation4], 1
    %s324 = scalar_lea.sflag [#allocation4], 1
    %325 = vsyncpa %s324, 1

</llo_original>
